<compile_context>
chip_gen: v5e
topology: v5e:2x2
jax: 0.10.0
libtpu: 0.0.40
codegen_flags: <defaults>
</compile_context>

<pallas_src>
from functools import partial

import numpy as np
import jax
import jax.numpy as jnp
from jax.experimental import pallas as pl
from jax.experimental.pallas import tpu as pltpu


# ----------------------------------------------------------------------------
# Kernel 1: non-spatial augmentation (hue/sat shift in HSV + gamma contrast)
# ----------------------------------------------------------------------------
def _non_spatial_kernel(params_ref, img_ref, out_ref):
    hue_shift = params_ref[0]      # degrees
    sat_shift = params_ref[1]      # [0, 1] scale
    gamma     = params_ref[2]

    inv255 = 1.0 / 255.0
    b = img_ref[0] * inv255        # (TR, W)  -> full 8x128 vregs
    g = img_ref[1] * inv255
    r = img_ref[2] * inv255

    # BGR -> HSV
    maxc  = jnp.maximum(jnp.maximum(r, g), b)
    minc  = jnp.minimum(jnp.minimum(r, g), b)
    v     = maxc
    delta = maxc - minc
    safe_d = jnp.where(delta > 0.0, delta, 1.0)
    safe_m = jnp.where(maxc > 0.0, maxc, 1.0)
    s = jnp.where(maxc > 0.0, delta / safe_m, 0.0)

    hr = jnp.mod((g - b) / safe_d, 6.0)
    hg = (b - r) / safe_d + 2.0
    hb = (r - g) / safe_d + 4.0
    h6 = jnp.where(maxc == r, hr, jnp.where(maxc == g, hg, hb))
    h  = jnp.where(delta > 0.0, 60.0 * h6, 0.0)          # degrees [0, 360)

    # AddToHueAndSaturation
    h = jnp.mod(h + hue_shift, 360.0)
    s = jnp.clip(s + sat_shift, 0.0, 1.0)

    # HSV -> RGB
    c  = v * s
    hp = h * (1.0 / 60.0)
    xc = c * (1.0 - jnp.abs(jnp.mod(hp, 2.0) - 1.0))
    m  = v - c
    r1 = jnp.where(hp < 1.0, c,
         jnp.where(hp < 2.0, xc,
         jnp.where(hp < 4.0, 0.0,
         jnp.where(hp < 5.0, xc, c))))
    g1 = jnp.where(hp < 1.0, xc,
         jnp.where(hp < 3.0, c,
         jnp.where(hp < 4.0, xc, 0.0)))
    b1 = jnp.where(hp < 2.0, 0.0,
         jnp.where(hp < 3.0, xc,
         jnp.where(hp < 5.0, c, xc)))

    # GammaContrast: y = x^gamma on [0,1] (EUP exp/log), keep all math in f32
    def _gamma_to_u8(ch):
        y = jnp.where(ch <= 0.0, 0.0,
                      jnp.exp(gamma * jnp.log(jnp.maximum(ch, 1e-12))))
        return jnp.clip(jnp.floor(y * 255.0 + 0.5), 0.0, 255.0)

    # store each channel row directly (no concatenate / extra (3,HW) temporary)
    out_ref[0] = _gamma_to_u8(b1 + m)
    out_ref[1] = _gamma_to_u8(g1 + m)
    out_ref[2] = _gamma_to_u8(r1 + m)


def _row_tile(H, W):
    # ~2 MiB per (3, TR, W) f32 block, TR a multiple of 8 (or the full H)
    tr = (2 * 1024 * 1024) // max(1, 3 * W * 4)
    tr = max(8, min(256, (tr // 8) * 8))
    return H if tr >= H else tr


def non_spatial_aug(img_chw, params):
    C, H, W = img_chw.shape
    TR = _row_tile(H, W)
    return pl.pallas_call(
        _non_spatial_kernel,
        out_shape=jax.ShapeDtypeStruct((C, H, W), jnp.float32),
        grid=(pl.cdiv(H, TR),),
        in_specs=[pl.BlockSpec(memory_space=pltpu.MemorySpace.SMEM),
                  pl.BlockSpec((C, TR, W), lambda i: (0, i, 0))],
        out_specs=pl.BlockSpec((C, TR, W), lambda i: (0, i, 0)),
        compiler_params=pltpu.CompilerParams(
            dimension_semantics=("parallel",)),
    )(params, img_chw)


# ----------------------------------------------------------------------------
# Kernel 2: spatial augmentation (inverse affine, order=0, cval=0), image+label fused
#   out[p, c] = src[src_idx(p), c]   realised as a K-tiled bf16 one-hot contraction
#   with output pixels on the MXU M dim and an f32 resident accumulator.
# ----------------------------------------------------------------------------
def _spatial_kernel(params_ref, src_ref, out_ref, *, T, KT, H, W, HW):
    p_id = pl.program_id(0)      # output-pixel tile
    k_id = pl.program_id(1)      # source-pixel tile (reduction axis, innermost)

    @pl.when(k_id == 0)
    def _():
        out_ref[...] = jnp.zeros_like(out_ref)

    # Output pixel coordinates for this tile, (T, 1) int32.
    p = jax.lax.broadcasted_iota(jnp.int32, (T, 1), 0) + p_id * T
    if W & (W - 1) == 0:                    # power-of-two width: shift/mask, no int div
        yo = p >> (W.bit_length() - 1)
        xo = p & (W - 1)
    else:
        yo = p // W
        xo = p - yo * W
    xof = xo.astype(jnp.float32)
    yof = yo.astype(jnp.float32)

    a00 = params_ref[0]; a01 = params_ref[1]; a02 = params_ref[2]
    a10 = params_ref[3]; a11 = params_ref[4]; a12 = params_ref[5]

    # inverse map: output pixel -> source pixel, nearest neighbour (order=0)
    xs = a00 * xof + a01 * yof + a02
    ys = a10 * xof + a11 * yof + a12
    xsi = jnp.floor(xs + 0.5).astype(jnp.int32)
    ysi = jnp.floor(ys + 0.5).astype(jnp.int32)
    valid = (xsi >= 0) & (xsi < W) & (ysi >= 0) & (ysi < H) & (yo < H)
    src_idx = jnp.where(valid, ysi * W + xsi, -1)           # (T, 1); -1 -> cval 0

    # One-hot selector for this K tile via (T,1)x(1,KT) broadcast compare, bf16-exact.
    kio = jax.lax.broadcasted_iota(jnp.int32, (1, KT), 1) + k_id * KT
    sel = jnp.where(src_idx == kio, 1.0, 0.0).astype(jnp.bfloat16)   # (T, KT)

    rhs = src_ref[...]                                      # (KT, 4) bf16
    # zero rows past HW so a padded tail K-block cannot inject stale VMEM data
    row_ok = (jax.lax.broadcasted_iota(jnp.int32, (KT, 1), 0) + k_id * KT) < HW
    rhs = jnp.where(row_ok, rhs, jnp.zeros_like(rhs))

    # TODO(synk): replace the one-hot MXU contraction with a true per-pixel gather
    # (jnp.take_along_axis / DMA gather) once Pallas-TPU exposes a robust cross-vreg
    # dynamic gather; until then the warp costs O(HW_out * HW_in) instead of O(HW).
    out_ref[...] += jnp.dot(sel, rhs, preferred_element_type=jnp.float32)


def spatial_aug(src_flat, params, H, W):
    HW, CP = src_flat.shape
    T = HW if HW <= 256 else 256           # output-pixel (MXU M) tile
    KT = HW if HW <= 2048 else 2048        # source-pixel (K) tile
    return pl.pallas_call(
        partial(_spatial_kernel, T=T, KT=KT, H=H, W=W, HW=HW),
        out_shape=jax.ShapeDtypeStruct((HW, CP), jnp.float32),
        grid=(pl.cdiv(HW, T), pl.cdiv(HW, KT)),
        in_specs=[pl.BlockSpec(memory_space=pltpu.MemorySpace.SMEM),
                  pl.BlockSpec((KT, CP), lambda p, k: (k, 0))],
        out_specs=pl.BlockSpec((T, CP), lambda p, k: (p, 0)),
        compiler_params=pltpu.CompilerParams(
            dimension_semantics=("parallel", "arbitrary"),
            vmem_limit_bytes=32 * 1024 * 1024),
    )(params, src_flat)


# ----------------------------------------------------------------------------
# Host glue: deterministic parameter sampling + affine matrix composition
# ----------------------------------------------------------------------------
def _affine_forward_matrix(H, W, rotate_deg, shear_deg, scale, tx_frac, ty_frac):
    # TODO(synk): imgaug's _AffineMatrixGenerator composition order is not replicated
    # bit-for-bit; this uses the standard centre-pivot composition.
    cx, cy = (W - 1) / 2.0, (H - 1) / 2.0
    rot = np.deg2rad(rotate_deg)
    sh = np.deg2rad(shear_deg)
    T_neg = np.array([[1, 0, -cx], [0, 1, -cy], [0, 0, 1]], np.float64)
    S = np.array([[scale, 0, 0], [0, scale, 0], [0, 0, 1]], np.float64)
    Sh = np.array([[1, -np.sin(sh), 0], [0, np.cos(sh), 0], [0, 0, 1]], np.float64)
    R = np.array([[np.cos(rot), -np.sin(rot), 0],
                  [np.sin(rot),  np.cos(rot), 0],
                  [0, 0, 1]], np.float64)
    Tt = np.array([[1, 0, tx_frac * W], [0, 1, ty_frac * H], [0, 0, 1]], np.float64)
    T_pos = np.array([[1, 0, cx], [0, 1, cy], [0, 0, 1]], np.float64)
    return T_pos @ R @ Sh @ Tt @ S @ T_neg


def _inverse_map_params(H, W, M_affine, fliplr, flipud):
    Lr = np.array([[-1, 0, W - 1], [0, 1, 0], [0, 0, 1]], np.float64) if fliplr else np.eye(3)
    Ud = np.array([[1, 0, 0], [0, -1, H - 1], [0, 0, 1]], np.float64) if flipud else np.eye(3)
    fwd = Ud @ Lr @ M_affine
    inv = np.linalg.inv(fwd)
    return np.array([inv[0, 0], inv[0, 1], inv[0, 2],
                     inv[1, 0], inv[1, 1], inv[1, 2]], np.float32)


def augmentor_forward(data, seed=0):
    image = data["image"]                 # (H, W, 3) uint8, BGR (imgaug convention)
    H, W, C = image.shape
    HW = H * W

    # ---- deterministic parameter draws ("to_deterministic()") ---------------
    # TODO(synk): imgaug's stateful RNG has no exact JAX equivalent; parameters are
    # drawn from jax.random.PRNGKey(seed) with matching distributions.
    key = jax.random.PRNGKey(seed)
    ks = jax.random.split(key, 5)
    rotate = float(jax.random.uniform(ks[0], (), minval=-45.0, maxval=45.0))
    scale  = float(jax.random.uniform(ks[1], (), minval=0.8, maxval=1.2))
    shear  = 5.0                               # iaa.Affine(shear=5)
    trans  = 0.01                              # translate_percent=(0.01, 0.01)
    hue    = float(jax.random.choice(ks[2], jnp.asarray([-11.0, 11.0])))  # list -> choice
    sat    = float(jax.random.choice(ks[3], jnp.asarray([-10.0, 10.0])))  # list -> choice
    gamma  = float(jax.random.uniform(ks[4], (), minval=0.7, maxval=1.7))  # GammaContrast()
    fliplr = False                             # iaa.Fliplr()/Flipud() default p=0
    flipud = False

    # ---- non-spatial aug (image only), channel-planar (3, H, W) -------------
    img_chw = jnp.transpose(image.astype(jnp.float32), (2, 0, 1))
    # TODO(synk): imgaug shifts hue/sat in OpenCV uint8 HSV (H in 0..179); here the
    # shift is applied in degrees / [0,1] saturation with a 180/255 scale.
    ns_params = jnp.array([hue * (180.0 / 255.0), sat / 255.0, gamma, 0.0], jnp.float32)
    img_chw = non_spatial_aug(img_chw, ns_params)

    # ---- spatial aug: image channels + label fused into one (HW, 4) pass ----
    # note: original source indexes data['lable'] (typo); 'label' is used here.
    label = data.get("label", None)
    if label is not None:
        lab_row = label.astype(jnp.float32).reshape(1, HW)
    else:
        lab_row = jnp.zeros((1, HW), jnp.float32)
    src = jnp.concatenate([img_chw.reshape(3, HW), lab_row], axis=0)    # (4, HW)
    src = src.T.astype(jnp.bfloat16)                                    # (HW, 4); 0..255 ints exact

    M = _affine_forward_matrix(H, W, rotate, shear, scale, trans, trans)
    sp_params = jnp.asarray(_inverse_map_params(H, W, M, fliplr, flipud))

    warped = spatial_aug(src, sp_params, H, W)                          # (HW, 4) f32

    out_image = warped[:, :3].reshape(H, W, 3)
    out_image = jnp.clip(jnp.floor(out_image + 0.5), 0.0, 255.0).astype(jnp.uint8)
    out = {"image": out_image}
    if label is not None:
        out["label"] = jnp.floor(warped[:, 3] + 0.5).reshape(H, W).astype(label.dtype)
    return out


if __name__ == "__main__":
    H = W = 16
    C = 3
    key = jax.random.PRNGKey(0)
    kimg, klab = jax.random.split(key, 2)
    image = jax.random.randint(kimg, (H, W, C), 0, 256, dtype=jnp.int32).astype(jnp.uint8)
    label = jax.random.randint(klab, (H, W), 0, 5, dtype=jnp.int32)

    data = {"image": image, "label": label}
    out = augmentor_forward(data, seed=0)
    jax.block_until_ready(out["image"])
    jax.block_until_ready(out["label"])

    assert out["image"].shape == (H, W, C) and out["image"].dtype == jnp.uint8
    assert out["label"].shape == (H, W) and out["label"].dtype == jnp.int32
    print("KERNEL_OK")
</pallas_src>

<mosaic_0001>
module attributes {stable_mosaic.version = 11 : i64} {
  func.func @_non_spatial_kernel(%arg0: i32, %arg1: memref<4xf32, #tpu.memory_space<smem>>, %arg2: memref<3x16x16xf32, #tpu.memory_space<vmem>>, %arg3: memref<3x16x16xf32, #tpu.memory_space<vmem>>) attributes {dimension_semantics = [#tpu.dimension_semantics<parallel>], iteration_bounds = array<i64: 1>, scalar_prefetch = 0 : i64, scratch_operands = 0 : i64, tpu.core_type = #tpu.core_type<tc>, window_params = [{transform_indices = @transform_0, window_bounds = array<i64: 4>}, {transform_indices = @transform_1, window_bounds = array<i64: 3, 16, 16>}, {transform_indices = @transform_2, window_bounds = array<i64: 3, 16, 16>}]} {
    %c0 = arith.constant 0 : index
    %0 = memref.load %arg1[%c0] : memref<4xf32, #tpu.memory_space<smem>>
    %c1 = arith.constant 1 : index
    %1 = memref.load %arg1[%c1] : memref<4xf32, #tpu.memory_space<smem>>
    %c2 = arith.constant 2 : index
    %2 = memref.load %arg1[%c2] : memref<4xf32, #tpu.memory_space<smem>>
    %c0_0 = arith.constant 0 : index
    %c0_1 = arith.constant 0 : index
    %c0_2 = arith.constant 0 : index
    %3 = vector.load %arg2[%c0_0, %c0_1, %c0_2] : memref<3x16x16xf32, #tpu.memory_space<vmem>>, vector<1x16x16xf32>
    %4 = vector.shape_cast %3 : vector<1x16x16xf32> to vector<16x16xf32>
    %cst = arith.constant 0.00392156886 : f32
    %5 = vector.broadcast %cst : f32 to vector<16x16xf32>
    %6 = arith.mulf %4, %5 : vector<16x16xf32>
    %c1_3 = arith.constant 1 : index
    %c0_4 = arith.constant 0 : index
    %c0_5 = arith.constant 0 : index
    %7 = vector.load %arg2[%c1_3, %c0_4, %c0_5] : memref<3x16x16xf32, #tpu.memory_space<vmem>>, vector<1x16x16xf32>
    %8 = vector.shape_cast %7 : vector<1x16x16xf32> to vector<16x16xf32>
    %cst_6 = arith.constant 0.00392156886 : f32
    %9 = vector.broadcast %cst_6 : f32 to vector<16x16xf32>
    %10 = arith.mulf %8, %9 : vector<16x16xf32>
    %c2_7 = arith.constant 2 : index
    %c0_8 = arith.constant 0 : index
    %c0_9 = arith.constant 0 : index
    %11 = vector.load %arg2[%c2_7, %c0_8, %c0_9] : memref<3x16x16xf32, #tpu.memory_space<vmem>>, vector<1x16x16xf32>
    %12 = vector.shape_cast %11 : vector<1x16x16xf32> to vector<16x16xf32>
    %cst_10 = arith.constant 0.00392156886 : f32
    %13 = vector.broadcast %cst_10 : f32 to vector<16x16xf32>
    %14 = arith.mulf %12, %13 : vector<16x16xf32>
    %15 = arith.maximumf %14, %10 : vector<16x16xf32>
    %16 = arith.maximumf %15, %6 : vector<16x16xf32>
    %17 = arith.minimumf %14, %10 : vector<16x16xf32>
    %18 = arith.minimumf %17, %6 : vector<16x16xf32>
    %19 = arith.subf %16, %18 : vector<16x16xf32>
    %cst_11 = arith.constant 0.000000e+00 : f32
    %20 = vector.broadcast %cst_11 : f32 to vector<16x16xf32>
    %21 = arith.cmpf ogt, %19, %20 : vector<16x16xf32>
    %cst_12 = arith.constant 1.000000e+00 : f32
    %22 = vector.broadcast %cst_12 : f32 to vector<16x16xf32>
    %23 = arith.select %21, %19, %22 : vector<16x16xi1>, vector<16x16xf32>
    %cst_13 = arith.constant 0.000000e+00 : f32
    %24 = vector.broadcast %cst_13 : f32 to vector<16x16xf32>
    %25 = arith.cmpf ogt, %16, %24 : vector<16x16xf32>
    %cst_14 = arith.constant 1.000000e+00 : f32
    %26 = vector.broadcast %cst_14 : f32 to vector<16x16xf32>
    %27 = arith.select %25, %16, %26 : vector<16x16xi1>, vector<16x16xf32>
    %cst_15 = arith.constant 0.000000e+00 : f32
    %28 = vector.broadcast %cst_15 : f32 to vector<16x16xf32>
    %29 = arith.cmpf ogt, %16, %28 : vector<16x16xf32>
    %30 = arith.divf %19, %27 : vector<16x16xf32>
    %cst_16 = arith.constant 0.000000e+00 : f32
    %31 = vector.broadcast %cst_16 : f32 to vector<16x16xf32>
    %32 = arith.select %29, %30, %31 : vector<16x16xi1>, vector<16x16xf32>
    %33 = arith.subf %10, %6 : vector<16x16xf32>
    %34 = arith.divf %33, %23 : vector<16x16xf32>
    %cst_17 = arith.constant 6.000000e+00 : f32
    %35 = vector.broadcast %cst_17 : f32 to vector<16x16xf32>
    %36 = arith.remf %34, %35 : vector<16x16xf32>
    %cst_18 = arith.constant 0.000000e+00 : f32
    %37 = vector.broadcast %cst_18 : f32 to vector<16x16xf32>
    %38 = arith.cmpf one, %36, %37 : vector<16x16xf32>
    %cst_19 = arith.constant 0.000000e+00 : f32
    %39 = vector.broadcast %cst_19 : f32 to vector<16x16xf32>
    %40 = arith.cmpf olt, %36, %39 : vector<16x16xf32>
    %cst_20 = arith.constant 0.000000e+00 : f32
    %41 = arith.cmpf olt, %cst_17, %cst_20 : f32
    %42 = vector.broadcast %41 : i1 to vector<16x16xi1>
    %43 = vector.broadcast %42 : vector<16x16xi1> to vector<16x16xi1>
    %44 = arith.xori %40, %43 : vector<16x16xi1>
    %45 = arith.andi %44, %38 : vector<16x16xi1>
    %46 = vector.broadcast %cst_17 : f32 to vector<16x16xf32>
    %47 = arith.addf %36, %46 : vector<16x16xf32>
    %48 = arith.select %45, %47, %36 : vector<16x16xi1>, vector<16x16xf32>
    %49 = arith.subf %6, %14 : vector<16x16xf32>
    %50 = arith.divf %49, %23 : vector<16x16xf32>
    %cst_21 = arith.constant 2.000000e+00 : f32
    %51 = vector.broadcast %cst_21 : f32 to vector<16x16xf32>
    %52 = arith.addf %50, %51 : vector<16x16xf32>
    %53 = arith.subf %14, %10 : vector<16x16xf32>
    %54 = arith.divf %53, %23 : vector<16x16xf32>
    %cst_22 = arith.constant 4.000000e+00 : f32
    %55 = vector.broadcast %cst_22 : f32 to vector<16x16xf32>
    %56 = arith.addf %54, %55 : vector<16x16xf32>
    %57 = arith.cmpf oeq, %16, %14 : vector<16x16xf32>
    %58 = arith.cmpf oeq, %16, %10 : vector<16x16xf32>
    %59 = arith.select %58, %52, %56 : vector<16x16xi1>, vector<16x16xf32>
    %60 = arith.select %57, %48, %59 : vector<16x16xi1>, vector<16x16xf32>
    %cst_23 = arith.constant 0.000000e+00 : f32
    %61 = vector.broadcast %cst_23 : f32 to vector<16x16xf32>
    %62 = arith.cmpf ogt, %19, %61 : vector<16x16xf32>
    %cst_24 = arith.constant 6.000000e+01 : f32
    %63 = vector.broadcast %cst_24 : f32 to vector<16x16xf32>
    %64 = arith.mulf %63, %60 : vector<16x16xf32>
    %cst_25 = arith.constant 0.000000e+00 : f32
    %65 = vector.broadcast %cst_25 : f32 to vector<16x16xf32>
    %66 = arith.select %62, %64, %65 : vector<16x16xi1>, vector<16x16xf32>
    %67 = vector.broadcast %0 : f32 to vector<16x16xf32>
    %68 = arith.addf %66, %67 : vector<16x16xf32>
    %cst_26 = arith.constant 3.600000e+02 : f32
    %69 = vector.broadcast %cst_26 : f32 to vector<16x16xf32>
    %70 = arith.remf %68, %69 : vector<16x16xf32>
    %cst_27 = arith.constant 0.000000e+00 : f32
    %71 = vector.broadcast %cst_27 : f32 to vector<16x16xf32>
    %72 = arith.cmpf one, %70, %71 : vector<16x16xf32>
    %cst_28 = arith.constant 0.000000e+00 : f32
    %73 = vector.broadcast %cst_28 : f32 to vector<16x16xf32>
    %74 = arith.cmpf olt, %70, %73 : vector<16x16xf32>
    %cst_29 = arith.constant 0.000000e+00 : f32
    %75 = arith.cmpf olt, %cst_26, %cst_29 : f32
    %76 = vector.broadcast %75 : i1 to vector<16x16xi1>
    %77 = vector.broadcast %76 : vector<16x16xi1> to vector<16x16xi1>
    %78 = arith.xori %74, %77 : vector<16x16xi1>
    %79 = arith.andi %78, %72 : vector<16x16xi1>
    %80 = vector.broadcast %cst_26 : f32 to vector<16x16xf32>
    %81 = arith.addf %70, %80 : vector<16x16xf32>
    %82 = arith.select %79, %81, %70 : vector<16x16xi1>, vector<16x16xf32>
    %83 = vector.broadcast %1 : f32 to vector<16x16xf32>
    %84 = arith.addf %32, %83 : vector<16x16xf32>
    %cst_30 = arith.constant 0.000000e+00 : f32
    %cst_31 = arith.constant 1.000000e+00 : f32
    %85 = vector.broadcast %cst_30 : f32 to vector<16x16xf32>
    %86 = arith.maximumf %85, %84 : vector<16x16xf32>
    %87 = vector.broadcast %cst_31 : f32 to vector<16x16xf32>
    %88 = arith.minimumf %87, %86 : vector<16x16xf32>
    %89 = arith.mulf %16, %88 : vector<16x16xf32>
    %cst_32 = arith.constant 0.0166666675 : f32
    %90 = vector.broadcast %cst_32 : f32 to vector<16x16xf32>
    %91 = arith.mulf %82, %90 : vector<16x16xf32>
    %cst_33 = arith.constant 2.000000e+00 : f32
    %92 = vector.broadcast %cst_33 : f32 to vector<16x16xf32>
    %93 = arith.remf %91, %92 : vector<16x16xf32>
    %cst_34 = arith.constant 0.000000e+00 : f32
    %94 = vector.broadcast %cst_34 : f32 to vector<16x16xf32>
    %95 = arith.cmpf one, %93, %94 : vector<16x16xf32>
    %cst_35 = arith.constant 0.000000e+00 : f32
    %96 = vector.broadcast %cst_35 : f32 to vector<16x16xf32>
    %97 = arith.cmpf olt, %93, %96 : vector<16x16xf32>
    %cst_36 = arith.constant 0.000000e+00 : f32
    %98 = arith.cmpf olt, %cst_33, %cst_36 : f32
    %99 = vector.broadcast %98 : i1 to vector<16x16xi1>
    %100 = vector.broadcast %99 : vector<16x16xi1> to vector<16x16xi1>
    %101 = arith.xori %97, %100 : vector<16x16xi1>
    %102 = arith.andi %101, %95 : vector<16x16xi1>
    %103 = vector.broadcast %cst_33 : f32 to vector<16x16xf32>
    %104 = arith.addf %93, %103 : vector<16x16xf32>
    %105 = arith.select %102, %104, %93 : vector<16x16xi1>, vector<16x16xf32>
    %cst_37 = arith.constant 1.000000e+00 : f32
    %106 = vector.broadcast %cst_37 : f32 to vector<16x16xf32>
    %107 = arith.subf %105, %106 : vector<16x16xf32>
    %108 = math.absf %107 : vector<16x16xf32>
    %cst_38 = arith.constant 1.000000e+00 : f32
    %109 = vector.broadcast %cst_38 : f32 to vector<16x16xf32>
    %110 = arith.subf %109, %108 : vector<16x16xf32>
    %111 = arith.mulf %89, %110 : vector<16x16xf32>
    %112 = arith.subf %16, %89 : vector<16x16xf32>
    %cst_39 = arith.constant 1.000000e+00 : f32
    %113 = vector.broadcast %cst_39 : f32 to vector<16x16xf32>
    %114 = arith.cmpf olt, %91, %113 : vector<16x16xf32>
    %cst_40 = arith.constant 2.000000e+00 : f32
    %115 = vector.broadcast %cst_40 : f32 to vector<16x16xf32>
    %116 = arith.cmpf olt, %91, %115 : vector<16x16xf32>
    %cst_41 = arith.constant 4.000000e+00 : f32
    %117 = vector.broadcast %cst_41 : f32 to vector<16x16xf32>
    %118 = arith.cmpf olt, %91, %117 : vector<16x16xf32>
    %cst_42 = arith.constant 5.000000e+00 : f32
    %119 = vector.broadcast %cst_42 : f32 to vector<16x16xf32>
    %120 = arith.cmpf olt, %91, %119 : vector<16x16xf32>
    %121 = arith.select %120, %111, %89 : vector<16x16xi1>, vector<16x16xf32>
    %cst_43 = arith.constant 0.000000e+00 : f32
    %122 = vector.broadcast %cst_43 : f32 to vector<16x16xf32>
    %123 = arith.select %118, %122, %121 : vector<16x16xi1>, vector<16x16xf32>
    %124 = arith.select %116, %111, %123 : vector<16x16xi1>, vector<16x16xf32>
    %125 = arith.select %114, %89, %124 : vector<16x16xi1>, vector<16x16xf32>
    %cst_44 = arith.constant 1.000000e+00 : f32
    %126 = vector.broadcast %cst_44 : f32 to vector<16x16xf32>
    %127 = arith.cmpf olt, %91, %126 : vector<16x16xf32>
    %cst_45 = arith.constant 3.000000e+00 : f32
    %128 = vector.broadcast %cst_45 : f32 to vector<16x16xf32>
    %129 = arith.cmpf olt, %91, %128 : vector<16x16xf32>
    %cst_46 = arith.constant 4.000000e+00 : f32
    %130 = vector.broadcast %cst_46 : f32 to vector<16x16xf32>
    %131 = arith.cmpf olt, %91, %130 : vector<16x16xf32>
    %cst_47 = arith.constant 0.000000e+00 : f32
    %132 = vector.broadcast %cst_47 : f32 to vector<16x16xf32>
    %133 = arith.select %131, %111, %132 : vector<16x16xi1>, vector<16x16xf32>
    %134 = arith.select %129, %89, %133 : vector<16x16xi1>, vector<16x16xf32>
    %135 = arith.select %127, %111, %134 : vector<16x16xi1>, vector<16x16xf32>
    %cst_48 = arith.constant 2.000000e+00 : f32
    %136 = vector.broadcast %cst_48 : f32 to vector<16x16xf32>
    %137 = arith.cmpf olt, %91, %136 : vector<16x16xf32>
    %cst_49 = arith.constant 3.000000e+00 : f32
    %138 = vector.broadcast %cst_49 : f32 to vector<16x16xf32>
    %139 = arith.cmpf olt, %91, %138 : vector<16x16xf32>
    %cst_50 = arith.constant 5.000000e+00 : f32
    %140 = vector.broadcast %cst_50 : f32 to vector<16x16xf32>
    %141 = arith.cmpf olt, %91, %140 : vector<16x16xf32>
    %142 = arith.select %141, %89, %111 : vector<16x16xi1>, vector<16x16xf32>
    %143 = arith.select %139, %111, %142 : vector<16x16xi1>, vector<16x16xf32>
    %cst_51 = arith.constant 0.000000e+00 : f32
    %144 = vector.broadcast %cst_51 : f32 to vector<16x16xf32>
    %145 = arith.select %137, %144, %143 : vector<16x16xi1>, vector<16x16xf32>
    %146 = arith.addf %145, %112 : vector<16x16xf32>
    %cst_52 = arith.constant 0.000000e+00 : f32
    %147 = vector.broadcast %cst_52 : f32 to vector<16x16xf32>
    %148 = arith.cmpf ole, %146, %147 : vector<16x16xf32>
    %cst_53 = arith.constant 9.99999996E-13 : f32
    %149 = vector.broadcast %cst_53 : f32 to vector<16x16xf32>
    %150 = arith.maximumf %146, %149 : vector<16x16xf32>
    %151 = math.log %150 : vector<16x16xf32>
    %152 = vector.broadcast %2 : f32 to vector<16x16xf32>
    %153 = arith.mulf %152, %151 : vector<16x16xf32>
    %154 = math.exp %153 : vector<16x16xf32>
    %cst_54 = arith.constant 0.000000e+00 : f32
    %155 = vector.broadcast %cst_54 : f32 to vector<16x16xf32>
    %156 = arith.select %148, %155, %154 : vector<16x16xi1>, vector<16x16xf32>
    %cst_55 = arith.constant 2.550000e+02 : f32
    %157 = vector.broadcast %cst_55 : f32 to vector<16x16xf32>
    %158 = arith.mulf %156, %157 : vector<16x16xf32>
    %cst_56 = arith.constant 5.000000e-01 : f32
    %159 = vector.broadcast %cst_56 : f32 to vector<16x16xf32>
    %160 = arith.addf %158, %159 : vector<16x16xf32>
    %161 = math.floor %160 : vector<16x16xf32>
    %cst_57 = arith.constant 0.000000e+00 : f32
    %cst_58 = arith.constant 2.550000e+02 : f32
    %162 = vector.broadcast %cst_57 : f32 to vector<16x16xf32>
    %163 = arith.maximumf %162, %161 : vector<16x16xf32>
    %164 = vector.broadcast %cst_58 : f32 to vector<16x16xf32>
    %165 = arith.minimumf %164, %163 : vector<16x16xf32>
    %c0_59 = arith.constant 0 : index
    %c0_60 = arith.constant 0 : index
    %c0_61 = arith.constant 0 : index
    %166 = vector.load %arg3[%c0_59, %c0_60, %c0_61] : memref<3x16x16xf32, #tpu.memory_space<vmem>>, vector<1x16x16xf32>
    %167 = vector.shape_cast %166 : vector<1x16x16xf32> to vector<16x16xf32>
    %168 = vector.shape_cast %165 : vector<16x16xf32> to vector<1x16x16xf32>
    tpu.vector_store %arg3[%c0_59, %c0_60, %c0_61], %168 {strides = array<i32>} : memref<3x16x16xf32, #tpu.memory_space<vmem>>, vector<1x16x16xf32>,
    %169 = arith.addf %135, %112 : vector<16x16xf32>
    %cst_62 = arith.constant 0.000000e+00 : f32
    %170 = vector.broadcast %cst_62 : f32 to vector<16x16xf32>
    %171 = arith.cmpf ole, %169, %170 : vector<16x16xf32>
    %cst_63 = arith.constant 9.99999996E-13 : f32
    %172 = vector.broadcast %cst_63 : f32 to vector<16x16xf32>
    %173 = arith.maximumf %169, %172 : vector<16x16xf32>
    %174 = math.log %173 : vector<16x16xf32>
    %175 = vector.broadcast %2 : f32 to vector<16x16xf32>
    %176 = arith.mulf %175, %174 : vector<16x16xf32>
    %177 = math.exp %176 : vector<16x16xf32>
    %cst_64 = arith.constant 0.000000e+00 : f32
    %178 = vector.broadcast %cst_64 : f32 to vector<16x16xf32>
    %179 = arith.select %171, %178, %177 : vector<16x16xi1>, vector<16x16xf32>
    %cst_65 = arith.constant 2.550000e+02 : f32
    %180 = vector.broadcast %cst_65 : f32 to vector<16x16xf32>
    %181 = arith.mulf %179, %180 : vector<16x16xf32>
    %cst_66 = arith.constant 5.000000e-01 : f32
    %182 = vector.broadcast %cst_66 : f32 to vector<16x16xf32>
    %183 = arith.addf %181, %182 : vector<16x16xf32>
    %184 = math.floor %183 : vector<16x16xf32>
    %cst_67 = arith.constant 0.000000e+00 : f32
    %cst_68 = arith.constant 2.550000e+02 : f32
    %185 = vector.broadcast %cst_67 : f32 to vector<16x16xf32>
    %186 = arith.maximumf %185, %184 : vector<16x16xf32>
    %187 = vector.broadcast %cst_68 : f32 to vector<16x16xf32>
    %188 = arith.minimumf %187, %186 : vector<16x16xf32>
    %c1_69 = arith.constant 1 : index
    %c0_70 = arith.constant 0 : index
    %c0_71 = arith.constant 0 : index
    %189 = vector.load %arg3[%c1_69, %c0_70, %c0_71] : memref<3x16x16xf32, #tpu.memory_space<vmem>>, vector<1x16x16xf32>
    %190 = vector.shape_cast %189 : vector<1x16x16xf32> to vector<16x16xf32>
    %191 = vector.shape_cast %188 : vector<16x16xf32> to vector<1x16x16xf32>
    tpu.vector_store %arg3[%c1_69, %c0_70, %c0_71], %191 {strides = array<i32>} : memref<3x16x16xf32, #tpu.memory_space<vmem>>, vector<1x16x16xf32>,
    %192 = arith.addf %125, %112 : vector<16x16xf32>
    %cst_72 = arith.constant 0.000000e+00 : f32
    %193 = vector.broadcast %cst_72 : f32 to vector<16x16xf32>
    %194 = arith.cmpf ole, %192, %193 : vector<16x16xf32>
    %cst_73 = arith.constant 9.99999996E-13 : f32
    %195 = vector.broadcast %cst_73 : f32 to vector<16x16xf32>
    %196 = arith.maximumf %192, %195 : vector<16x16xf32>
    %197 = math.log %196 : vector<16x16xf32>
    %198 = vector.broadcast %2 : f32 to vector<16x16xf32>
    %199 = arith.mulf %198, %197 : vector<16x16xf32>
    %200 = math.exp %199 : vector<16x16xf32>
    %cst_74 = arith.constant 0.000000e+00 : f32
    %201 = vector.broadcast %cst_74 : f32 to vector<16x16xf32>
    %202 = arith.select %194, %201, %200 : vector<16x16xi1>, vector<16x16xf32>
    %cst_75 = arith.constant 2.550000e+02 : f32
    %203 = vector.broadcast %cst_75 : f32 to vector<16x16xf32>
    %204 = arith.mulf %202, %203 : vector<16x16xf32>
    %cst_76 = arith.constant 5.000000e-01 : f32
    %205 = vector.broadcast %cst_76 : f32 to vector<16x16xf32>
    %206 = arith.addf %204, %205 : vector<16x16xf32>
    %207 = math.floor %206 : vector<16x16xf32>
    %cst_77 = arith.constant 0.000000e+00 : f32
    %cst_78 = arith.constant 2.550000e+02 : f32
    %208 = vector.broadcast %cst_77 : f32 to vector<16x16xf32>
    %209 = arith.maximumf %208, %207 : vector<16x16xf32>
    %210 = vector.broadcast %cst_78 : f32 to vector<16x16xf32>
    %211 = arith.minimumf %210, %209 : vector<16x16xf32>
    %c2_79 = arith.constant 2 : index
    %c0_80 = arith.constant 0 : index
    %c0_81 = arith.constant 0 : index
    %212 = vector.load %arg3[%c2_79, %c0_80, %c0_81] : memref<3x16x16xf32, #tpu.memory_space<vmem>>, vector<1x16x16xf32>
    %213 = vector.shape_cast %212 : vector<1x16x16xf32> to vector<16x16xf32>
    %214 = vector.shape_cast %211 : vector<16x16xf32> to vector<1x16x16xf32>
    tpu.vector_store %arg3[%c2_79, %c0_80, %c0_81], %214 {strides = array<i32>} : memref<3x16x16xf32, #tpu.memory_space<vmem>>, vector<1x16x16xf32>,
    return
  }
  func.func @transform_0(%arg0: i32) -> i32 {
    %c0_i32 = arith.constant 0 : i32
    %c0_i32_0 = arith.constant 0 : i32
    return %c0_i32 : i32
  }
  func.func @transform_1(%arg0: i32) -> (i32, i32, i32) {
    %c0_i32 = arith.constant 0 : i32
    %c0_i32_0 = arith.constant 0 : i32
    %c0_i32_1 = arith.constant 0 : i32
    return %c0_i32, %arg0, %c0_i32_0 : i32, i32, i32
  }
  func.func @transform_2(%arg0: i32) -> (i32, i32, i32) {
    %c0_i32 = arith.constant 0 : i32
    %c0_i32_0 = arith.constant 0 : i32
    %c0_i32_1 = arith.constant 0 : i32
    return %c0_i32, %arg0, %c0_i32_0 : i32, i32, i32
  }
}

</mosaic_0001>

<llo_original>
// kernel: tpu_custom_call.1
$region0: #{tpu_custom_call.1}
  #allocation0 [shape = 'u32[]', space=smem, size = 0x4, offset = 0x4, fixed_abs, tag = 'smem constant byte address 0x4 - core index']
  #allocation1 [shape = 'u32[72,128]{1,0:T(1,128)}', space=vmem, size = 0x9000, scoped, tag = 'internal scratch']
  %s0 = inlined_call_operand.hbm [shape: f32[4], index: 0, kind: input, shape index: {}]
  %s1 = inlined_call_operand.hbm [shape: f32[3,16,16], index: 1, kind: input, shape index: {}]
  %s2 = inlined_call_operand.hbm [shape: f32[3,16,16], index: 2, kind: output, shape index: {}]
  %s3 = sld [smem:[#allocation0]]
  $region26: #{tpu_custom_call.1} parent=0
    _
  %s5 = ssub.s32 1, %s3
  %s6 = scalar_select 0, %s5, %s3
  $region1: #{tpu_custom_call.1} parent=0
    #allocation2 [shape = 'u8[512]{0}', space=smem, size = 0x200, scoped, tag = 'input window, operand 0, single buffered']
    #allocation3 [shape = 's32[1]{0}', space=sflag, size = 0x4, scoped, tag = 'scoped memory for tpu_custom_call.1']
    #allocation4 [shape = 's32[1]{0}', space=sflag, size = 0x4, scoped, tag = 'scoped memory for tpu_custom_call.1']
    #allocation5 [shape = 's32[1]{0}', space=sflag, size = 0x4, scoped, tag = 'scoped memory for tpu_custom_call.1']
    #allocation6 [shape = 'u8[24576]{0}', space=vmem, size = 0x6000, scoped, tag = 'input window, operand 1, single buffered']
    #allocation7 [shape = 'u8[24576]{0}', space=vmem, size = 0x6000, scoped, tag = 'output window, operand 0, single buffered']
    %7 = vsyncpa [#allocation5], 0
    %8 = vsyncpa [#allocation3], 0
    %9 = vsyncpa [#allocation4], 0
    // Predicated region
    $region2: #{tpu_custom_call.1} parent=1 // pred_check
      _
    $region3: #{tpu_custom_call.1} parent=1 // pred_check_branch
      %11 = sbr.rel (0) target = $region5
    $region4: #{tpu_custom_call.1} parent=1 // pred_region
      %13 = vsyncadd [#allocation5], 0
      %s15 = sshll.u32 %s0, 4
      %s16 = int_to_ptr.hbm [resolvable:$true] %s15
      %18 = dma.hbm_to_smem %s16, 16, [#allocation2], [#allocation5]
    $region5: #{tpu_custom_call.1} parent=1 // pred_fallthru
      _
    // Predicated region
    $region6: #{tpu_custom_call.1} parent=1 // pred_check
      _
    $region7: #{tpu_custom_call.1} parent=1 // pred_check_branch
      %20 = sbr.rel (0) target = $region9
    $region8: #{tpu_custom_call.1} parent=1 // pred_region
      %22 = vsyncadd [#allocation3], 0
      %s23 = sshll.u32 %s1, 4
      %s24 = int_to_ptr.hbm [resolvable:$true] %s23
      %s25 = sshll.u32 [#allocation6], 4
      %s26 = int_to_ptr.vmem [resolvable:$true] %s25
      %31 = dma.hbm_to_vmem [thread:$0]  %s24, 768, %s26, [#allocation3], 128, 128, 8
    $region9: #{tpu_custom_call.1} parent=1 // pred_fallthru
      _
    // Predicated region
    $region10: #{tpu_custom_call.1} parent=1 // pred_check
      _
    $region11: #{tpu_custom_call.1} parent=1 // pred_check_branch
      %33 = sbr.rel (0) target = $region13
    $region12: #{tpu_custom_call.1} parent=1 // pred_region
      %35 = dma.done [#allocation5], 16
    $region13: #{tpu_custom_call.1} parent=1 // pred_fallthru
      _
    // Predicated region
    $region14: #{tpu_custom_call.1} parent=1 // pred_check
      _
    $region15: #{tpu_custom_call.1} parent=1 // pred_check_branch
      %37 = sbr.rel (0) target = $region17
    $region16: #{tpu_custom_call.1} parent=1 // pred_region
      %39 = dma.done [#allocation3], 768
    $region17: #{tpu_custom_call.1} parent=1 // pred_fallthru
      _
    %40 = sfence
    %s41 = sld [smem:[#allocation2]]
    %s42 = sld [smem:[#allocation2 + $0x1]]
    %s43 = sld [smem:[#allocation2 + $0x2]]
    %v44 = vld [vmem:[#allocation6] sm:$0xff]
    %v45 = vld [vmem:[#allocation6 + $0x8] sm:$0xff]
    %v46 = vmul.f32 %v44, 0.003921569
    %v47 = vmul.f32 %v45, 0.003921569
    %s48 = scalar_lea.vmem [#allocation6], 16
    %v49 = vld [vmem:[%s48] sm:$0xff]
    %v50 = vld [vmem:[%s48 + $0x8] sm:$0xff]
    %v51 = vmul.f32 %v49, 0.003921569
    %v52 = vmul.f32 %v50, 0.003921569
    %s53 = scalar_lea.vmem [#allocation6], 32
    %v54 = vld [vmem:[%s53] sm:$0xff]
    %v55 = vld [vmem:[%s53 + $0x8] sm:$0xff]
    %v56 = vmul.f32 %v54, 0.003921569
    %v57 = vmul.f32 %v55, 0.003921569
    %v58 = vmax.f32 %v56, %v51
    %v59 = vmax.f32 %v57, %v52
    %v60 = vmax.f32 %v58, %v46
    %v61 = vmax.f32 %v59, %v47
    %v62 = vmin.f32 %v56, %v51
    %v63 = vmin.f32 %v57, %v52
    %v64 = vmin.f32 %v62, %v46
    %v65 = vmin.f32 %v63, %v47
    %v66 = vsub.f32 %v60, %v64
    %v67 = vsub.f32 %v61, %v65
    %vm68 = vcmp.gt.f32.partialorder %v66, 0.0
    %vm69 = vcmp.gt.f32.partialorder %v67, 0.0
    %v70 = vsel %vm68, %v66, 1.0
    %v71 = vsel %vm69, %v67, 1.0
    %vm72 = vcmp.gt.f32.partialorder %v60, 0.0
    %vm73 = vcmp.gt.f32.partialorder %v61, 0.0
    %v74 = vsel %vm72, %v60, 1.0
    %v75 = vsel %vm73, %v61, 1.0
    %v76 = vrcp.pop %v74
    %v77 = vmul.f32 %v74, %v76
    %v78 = vsub.f32 1.0, %v77
    %v79 = vmul.f32 %v76, %v78
    %v80 = vadd.f32 %v76, %v79
    %vm81 = vweird.f32 %v74
    %vm82 = vweird.f32 %v76
    %vm83 = vmor %vm81, %vm82
    %v84 = vsel %vm83, %v76, %v80
    %v85 = vand.u32 2147483647, %v74
    %vm86 = vcmp.eq.f32.partialorder %v85, 8.507059e+37
    %v87 = vand.u32 %v74, 2147483648
    %v88 = vor.u32 1.1754944e-38, %v87
    %v89 = vsel %vm86, %v88, %v84
    %v90 = vmul.f32 %v66, %v89
    %v91 = vrcp.pop %v75
    %v92 = vmul.f32 %v75, %v91
    %v93 = vsub.f32 1.0, %v92
    %v94 = vmul.f32 %v91, %v93
    %v95 = vadd.f32 %v91, %v94
    %vm96 = vweird.f32 %v75
    %vm97 = vweird.f32 %v91
    %vm98 = vmor %vm96, %vm97
    %v99 = vsel %vm98, %v91, %v95
    %v100 = vand.u32 2147483647, %v75
    %vm101 = vcmp.eq.f32.partialorder %v100, 8.507059e+37
    %v102 = vand.u32 %v75, 2147483648
    %v103 = vor.u32 1.1754944e-38, %v102
    %v104 = vsel %vm101, %v103, %v99
    %v105 = vmul.f32 %v67, %v104
    %v106 = vsel %vm72, %v90, 0.0
    %v107 = vsel %vm73, %v105, 0.0
    %v108 = vsub.f32 %v51, %v46
    %v109 = vsub.f32 %v52, %v47
    %v110 = vrcp.pop %v70
    %v111 = vmul.f32 %v70, %v110
    %v112 = vsub.f32 1.0, %v111
    %v113 = vmul.f32 %v110, %v112
    %v114 = vadd.f32 %v110, %v113
    %vm115 = vweird.f32 %v70
    %vm116 = vweird.f32 %v110
    %vm117 = vmor %vm115, %vm116
    %v118 = vsel %vm117, %v110, %v114
    %v119 = vand.u32 2147483647, %v70
    %vm120 = vcmp.eq.f32.partialorder %v119, 8.507059e+37
    %v121 = vand.u32 %v70, 2147483648
    %v122 = vor.u32 1.1754944e-38, %v121
    %v123 = vsel %vm120, %v122, %v118
    %v124 = vmul.f32 %v108, %v123
    %v125 = vrcp.pop %v71
    %v126 = vmul.f32 %v71, %v125
    %v127 = vsub.f32 1.0, %v126
    %v128 = vmul.f32 %v125, %v127
    %v129 = vadd.f32 %v125, %v128
    %vm130 = vweird.f32 %v71
    %vm131 = vweird.f32 %v125
    %vm132 = vmor %vm130, %vm131
    %v133 = vsel %vm132, %v125, %v129
    %v134 = vand.u32 2147483647, %v71
    %vm135 = vcmp.eq.f32.partialorder %v134, 8.507059e+37
    %v136 = vand.u32 %v71, 2147483648
    %v137 = vor.u32 1.1754944e-38, %v136
    %v138 = vsel %vm135, %v137, %v133
    %v139 = vmul.f32 %v109, %v138
    %v140 = vand.u32 2147483647, %v124
    %v141 = vrcp.pop 6.0
    %v142 = vmul.f32 6.0, %v141
    %v143 = vsub.f32 1.0, %v142
    %v144 = vmul.f32 %v141, %v143
    %v145 = vadd.f32 %v141, %v144
    %vm146 = vweird.f32 %v141
    %v147 = vsel %vm146, %v141, %v145
    %v148 = vmul.f32 %v140, %v147
    %v149 = vfloor.f32 %v148
    %v150 = vmul.f32 %v149, 6.0
    %v151 = vsub.f32 %v140, %v150
    %vm152 = vcmp.eq.f32.partialorder %v151, 6.0
    %v153 = vsel %vm152, 0.0, %v151
    %v154 = vand.u32 2147483647, %v153
    %v155 = vand.u32 %v124, 2147483648
    %v156 = vor.u32 %v154, %v155
    %v157 = vand.u32 2147483647, %v139
    %v158 = vrcp.pop 6.0
    %v159 = vmul.f32 6.0, %v158
    %v160 = vsub.f32 1.0, %v159
    %v161 = vmul.f32 %v158, %v160
    %v162 = vadd.f32 %v158, %v161
    %vm163 = vweird.f32 %v158
    %v164 = vsel %vm163, %v158, %v162
    %v165 = vmul.f32 %v157, %v164
    %v166 = vfloor.f32 %v165
    %v167 = vmul.f32 %v166, 6.0
    %v168 = vsub.f32 %v157, %v167
    %vm169 = vcmp.eq.f32.partialorder %v168, 6.0
    %v170 = vsel %vm169, 0.0, %v168
    %v171 = vand.u32 2147483647, %v170
    %v172 = vand.u32 %v139, 2147483648
    %v173 = vor.u32 %v171, %v172
    %vm174 = vcmp.ne.f32.partialorder %v156, 0.0
    %vm175 = vcmp.ne.f32.partialorder %v173, 0.0
    %vm176 = vcmp.lt.f32.partialorder %v156, 0.0
    %vm177 = vcmp.lt.f32.partialorder %v173, 0.0
    %vm178 = vmand %vm176, %vm174
    %vm179 = vmand %vm177, %vm175
    %v180 = vadd.f32 %v156, 6.0
    %v181 = vadd.f32 %v173, 6.0
    %v182 = vsel %vm178, %v180, %v156
    %v183 = vsel %vm179, %v181, %v173
    %v184 = vsub.f32 %v46, %v56
    %v185 = vsub.f32 %v47, %v57
    %v186 = vmul.f32 %v184, %v123
    %v187 = vmul.f32 %v185, %v138
    %v188 = vadd.f32 %v186, 2.0
    %v189 = vadd.f32 %v187, 2.0
    %v190 = vsub.f32 %v56, %v51
    %v191 = vsub.f32 %v57, %v52
    %v192 = vmul.f32 %v190, %v123
    %v193 = vmul.f32 %v191, %v138
    %v194 = vadd.f32 %v192, 4.0
    %v195 = vadd.f32 %v193, 4.0
    %vm196 = vcmp.eq.f32.partialorder %v60, %v56
    %vm197 = vcmp.eq.f32.partialorder %v61, %v57
    %vm198 = vcmp.eq.f32.partialorder %v60, %v51
    %vm199 = vcmp.eq.f32.partialorder %v61, %v52
    %v200 = vsel %vm198, %v188, %v194
    %v201 = vsel %vm199, %v189, %v195
    %v202 = vsel %vm196, %v182, %v200
    %v203 = vsel %vm197, %v183, %v201
    %v204 = vmul.f32 %v202, 60.0
    %v205 = vmul.f32 %v203, 60.0
    %v206 = vsel %vm68, %v204, 0.0
    %v207 = vsel %vm69, %v205, 0.0
    %v208 = vstv %s41
    %v209 = vadd.f32 %v206, %v208
    %v210 = vadd.f32 %v207, %v208
    %v211 = vand.u32 2147483647, %v209
    %v212 = vrcp.pop 360.0
    %v213 = vmul.f32 360.0, %v212
    %v214 = vsub.f32 1.0, %v213
    %v215 = vmul.f32 %v212, %v214
    %v216 = vadd.f32 %v212, %v215
    %vm217 = vweird.f32 %v212
    %v218 = vsel %vm217, %v212, %v216
    %v219 = vmul.f32 %v211, %v218
    %v220 = vfloor.f32 %v219
    %v221 = vmul.f32 %v220, 360.0
    %v222 = vsub.f32 %v211, %v221
    %vm223 = vcmp.eq.f32.partialorder %v222, 360.0
    %v224 = vsel %vm223, 0.0, %v222
    %v225 = vand.u32 2147483647, %v224
    %v226 = vand.u32 %v209, 2147483648
    %v227 = vor.u32 %v225, %v226
    %v228 = vand.u32 2147483647, %v210
    %v229 = vrcp.pop 360.0
    %v230 = vmul.f32 360.0, %v229
    %v231 = vsub.f32 1.0, %v230
    %v232 = vmul.f32 %v229, %v231
    %v233 = vadd.f32 %v229, %v232
    %vm234 = vweird.f32 %v229
    %v235 = vsel %vm234, %v229, %v233
    %v236 = vmul.f32 %v228, %v235
    %v237 = vfloor.f32 %v236
    %v238 = vmul.f32 %v237, 360.0
    %v239 = vsub.f32 %v228, %v238
    %vm240 = vcmp.eq.f32.partialorder %v239, 360.0
    %v241 = vsel %vm240, 0.0, %v239
    %v242 = vand.u32 2147483647, %v241
    %v243 = vand.u32 %v210, 2147483648
    %v244 = vor.u32 %v242, %v243
    %vm245 = vcmp.ne.f32.partialorder %v227, 0.0
    %vm246 = vcmp.ne.f32.partialorder %v244, 0.0
    %vm247 = vcmp.lt.f32.partialorder %v227, 0.0
    %vm248 = vcmp.lt.f32.partialorder %v244, 0.0
    %vm249 = vmand %vm247, %vm245
    %vm250 = vmand %vm248, %vm246
    %v251 = vadd.f32 %v227, 360.0
    %v252 = vadd.f32 %v244, 360.0
    %v253 = vsel %vm249, %v251, %v227
    %v254 = vsel %vm250, %v252, %v244
    %v255 = vstv %s42
    %v256 = vadd.f32 %v106, %v255
    %v257 = vadd.f32 %v107, %v255
    %v258 = vmax.f32 %v256, 0.0
    %v259 = vmax.f32 %v257, 0.0
    %v260 = vmin.f32 %v258, 1.0
    %v261 = vmin.f32 %v259, 1.0
    %v262 = vmul.f32 %v60, %v260
    %v263 = vmul.f32 %v61, %v261
    %v264 = vmul.f32 %v253, 0.016666668
    %v265 = vmul.f32 %v254, 0.016666668
    %v266 = vand.u32 2147483647, %v264
    %v267 = vrcp.pop 2.0
    %v268 = vmul.f32 2.0, %v267
    %v269 = vsub.f32 1.0, %v268
    %v270 = vmul.f32 %v267, %v269
    %v271 = vadd.f32 %v267, %v270
    %vm272 = vweird.f32 %v267
    %v273 = vsel %vm272, %v267, %v271
    %v274 = vmul.f32 %v266, %v273
    %v275 = vfloor.f32 %v274
    %v276 = vmul.f32 %v275, 2.0
    %v277 = vsub.f32 %v266, %v276
    %vm278 = vcmp.eq.f32.partialorder %v277, 2.0
    %v279 = vsel %vm278, 0.0, %v277
    %v280 = vand.u32 2147483647, %v279
    %v281 = vand.u32 %v264, 2147483648
    %v282 = vor.u32 %v280, %v281
    %v283 = vand.u32 2147483647, %v265
    %v284 = vrcp.pop 2.0
    %v285 = vmul.f32 2.0, %v284
    %v286 = vsub.f32 1.0, %v285
    %v287 = vmul.f32 %v284, %v286
    %v288 = vadd.f32 %v284, %v287
    %vm289 = vweird.f32 %v284
    %v290 = vsel %vm289, %v284, %v288
    %v291 = vmul.f32 %v283, %v290
    %v292 = vfloor.f32 %v291
    %v293 = vmul.f32 %v292, 2.0
    %v294 = vsub.f32 %v283, %v293
    %vm295 = vcmp.eq.f32.partialorder %v294, 2.0
    %v296 = vsel %vm295, 0.0, %v294
    %v297 = vand.u32 2147483647, %v296
    %v298 = vand.u32 %v265, 2147483648
    %v299 = vor.u32 %v297, %v298
    %vm300 = vcmp.ne.f32.partialorder %v282, 0.0
    %vm301 = vcmp.ne.f32.partialorder %v299, 0.0
    %vm302 = vcmp.lt.f32.partialorder %v282, 0.0
    %vm303 = vcmp.lt.f32.partialorder %v299, 0.0
    %vm304 = vmand %vm302, %vm300
    %vm305 = vmand %vm303, %vm301
    %v306 = vadd.f32 %v282, 2.0
    %v307 = vadd.f32 %v299, 2.0
    %v308 = vsel %vm304, %v306, %v282
    %v309 = vsel %vm305, %v307, %v299
    %v310 = vsub.f32 %v308, 1.0
    %v311 = vsub.f32 %v309, 1.0
    %v312 = vand.u32 2147483647, %v310
    %v313 = vand.u32 2147483647, %v311
    %v314 = vsub.f32 1.0, %v312
    %v315 = vsub.f32 1.0, %v313
    %v316 = vmul.f32 %v262, %v314
    %v317 = vmul.f32 %v263, %v315
    %v318 = vsub.f32 %v60, %v262
    %v319 = vsub.f32 %v61, %v263
    %vm320 = vcmp.lt.f32.partialorder %v264, 1.0
    %vm321 = vcmp.lt.f32.partialorder %v265, 1.0
    %vm322 = vcmp.lt.f32.partialorder %v264, 2.0
    %vm323 = vcmp.lt.f32.partialorder %v265, 2.0
    %vm324 = vcmp.lt.f32.partialorder %v264, 4.0
    %vm325 = vcmp.lt.f32.partialorder %v265, 4.0
    %vm326 = vcmp.lt.f32.partialorder %v264, 5.0
    %vm327 = vcmp.lt.f32.partialorder %v265, 5.0
    %v328 = vsel %vm326, %v316, %v262
    %v329 = vsel %vm327, %v317, %v263
    %v330 = vsel %vm324, 0.0, %v328
    %v331 = vsel %vm325, 0.0, %v329
    %v332 = vsel %vm322, %v316, %v330
    %v333 = vsel %vm323, %v317, %v331
    %v334 = vsel %vm320, %v262, %v332
    %v335 = vsel %vm321, %v263, %v333
    %vm336 = vcmp.lt.f32.partialorder %v264, 3.0
    %vm337 = vcmp.lt.f32.partialorder %v265, 3.0
    %v338 = vsel %vm324, %v316, 0.0
    %v339 = vsel %vm325, %v317, 0.0
    %v340 = vsel %vm336, %v262, %v338
    %v341 = vsel %vm337, %v263, %v339
    %v342 = vsel %vm320, %v316, %v340
    %v343 = vsel %vm321, %v317, %v341
    %v344 = vsel %vm326, %v262, %v316
    %v345 = vsel %vm327, %v263, %v317
    %v346 = vsel %vm336, %v316, %v344
    %v347 = vsel %vm337, %v317, %v345
    %v348 = vsel %vm322, 0.0, %v346
    %v349 = vsel %vm323, 0.0, %v347
    %v350 = vadd.f32 %v348, %v318
    %v351 = vadd.f32 %v349, %v319
    %vm352 = vcmp.le.f32.partialorder %v350, 0.0
    %vm353 = vcmp.le.f32.partialorder %v351, 0.0
    %v354 = vmax.f32 %v350, 1e-12
    %v355 = vmax.f32 %v351, 1e-12
    %v356 = vlog2.pop %v354
    %v357 = vmul.f32 %v356, 0.6931472
    %v358 = vlog2.pop %v355
    %v359 = vmul.f32 %v358, 0.6931472
    %v360 = vstv %s43
    %v361 = vmul.f32 %v360, %v357
    %v362 = vmul.f32 %v360, %v359
    %v363 = vmul.f32 %v361, 1.442695
    %v364 = vpow.pop %v363
    %v365 = vmul.f32 %v362, 1.442695
    %v366 = vpow.pop %v365
    %v367 = vsel %vm352, 0.0, %v364
    %v368 = vsel %vm353, 0.0, %v366
    %v369 = vmul.f32 %v367, 255.0
    %v370 = vmul.f32 %v368, 255.0
    %v371 = vadd.f32 %v369, 0.5
    %v372 = vadd.f32 %v370, 0.5
    %v373 = vfloor.f32 %v371
    %v374 = vfloor.f32 %v372
    %v375 = vmax.f32 %v373, 0.0
    %v376 = vmax.f32 %v374, 0.0
    %v377 = vmin.f32 %v375, 255.0
    %v378 = vmin.f32 %v376, 255.0
    %vm379 = vcmask 130048
    %380 = vst.msk [vmem:[#allocation7] sm:$0xff] %vm379, %v377
    %381 = vst.msk [vmem:[#allocation7 + $0x8] sm:$0xff] %vm379, %v378
    %v382 = vadd.f32 %v342, %v318
    %v383 = vadd.f32 %v343, %v319
    %vm384 = vcmp.le.f32.partialorder %v382, 0.0
    %vm385 = vcmp.le.f32.partialorder %v383, 0.0
    %v386 = vmax.f32 %v382, 1e-12
    %v387 = vmax.f32 %v383, 1e-12
    %v388 = vlog2.pop %v386
    %v389 = vmul.f32 %v388, 0.6931472
    %v390 = vlog2.pop %v387
    %v391 = vmul.f32 %v390, 0.6931472
    %v392 = vmul.f32 %v360, %v389
    %v393 = vmul.f32 %v360, %v391
    %v394 = vmul.f32 %v392, 1.442695
    %v395 = vpow.pop %v394
    %v396 = vmul.f32 %v393, 1.442695
    %v397 = vpow.pop %v396
    %v398 = vsel %vm384, 0.0, %v395
    %v399 = vsel %vm385, 0.0, %v397
    %v400 = vmul.f32 %v398, 255.0
    %v401 = vmul.f32 %v399, 255.0
    %v402 = vadd.f32 %v400, 0.5
    %v403 = vadd.f32 %v401, 0.5
    %v404 = vfloor.f32 %v402
    %v405 = vfloor.f32 %v403
    %v406 = vmax.f32 %v404, 0.0
    %v407 = vmax.f32 %v405, 0.0
    %v408 = vmin.f32 %v406, 255.0
    %v409 = vmin.f32 %v407, 255.0
    %s410 = scalar_lea.vmem [#allocation7], 16
    %411 = vst.msk [vmem:[%s410] sm:$0xff] %vm379, %v408
    %412 = vst.msk [vmem:[%s410 + $0x8] sm:$0xff] %vm379, %v409
    %v413 = vadd.f32 %v334, %v318
    %v414 = vadd.f32 %v335, %v319
    %vm415 = vcmp.le.f32.partialorder %v413, 0.0
    %vm416 = vcmp.le.f32.partialorder %v414, 0.0
    %v417 = vmax.f32 %v413, 1e-12
    %v418 = vmax.f32 %v414, 1e-12
    %v419 = vlog2.pop %v417
    %v420 = vmul.f32 %v419, 0.6931472
    %v421 = vlog2.pop %v418
    %v422 = vmul.f32 %v421, 0.6931472
    %v423 = vmul.f32 %v360, %v420
    %v424 = vmul.f32 %v360, %v422
    %v425 = vmul.f32 %v423, 1.442695
    %v426 = vpow.pop %v425
    %v427 = vmul.f32 %v424, 1.442695
    %v428 = vpow.pop %v427
    %v429 = vsel %vm415, 0.0, %v426
    %v430 = vsel %vm416, 0.0, %v428
    %v431 = vmul.f32 %v429, 255.0
    %v432 = vmul.f32 %v430, 255.0
    %v433 = vadd.f32 %v431, 0.5
    %v434 = vadd.f32 %v432, 0.5
    %v435 = vfloor.f32 %v433
    %v436 = vfloor.f32 %v434
    %v437 = vmax.f32 %v435, 0.0
    %v438 = vmax.f32 %v436, 0.0
    %v439 = vmin.f32 %v437, 255.0
    %v440 = vmin.f32 %v438, 255.0
    %s441 = scalar_lea.vmem [#allocation7], 32
    %442 = vst.msk [vmem:[%s441] sm:$0xff] %vm379, %v439
    %443 = vst.msk [vmem:[%s441 + $0x8] sm:$0xff] %vm379, %v440
    // Predicated region
    $region18: #{tpu_custom_call.1} parent=1 // pred_check
      _
    $region19: #{tpu_custom_call.1} parent=1 // pred_check_branch
      %445 = sbr.rel (0) target = $region21
    $region20: #{tpu_custom_call.1} parent=1 // pred_region
      %447 = vsyncadd [#allocation4], 0
      %s448 = sshll.u32 [#allocation7], 4
      %s449 = int_to_ptr.vmem [resolvable:$true] %s448
      %s450 = sshll.u32 %s2, 4
      %s451 = int_to_ptr.hbm [resolvable:$true] %s450
      %456 = dma.vmem_to_hbm [thread:$0]  %s449, 768, %s451, [#allocation4], 128, 128, 8
    $region21: #{tpu_custom_call.1} parent=1 // pred_fallthru
      _
    // Predicated region
    $region22: #{tpu_custom_call.1} parent=1 // pred_check
      _
    $region23: #{tpu_custom_call.1} parent=1 // pred_check_branch
      %458 = sbr.rel (0) target = $region25
    $region24: #{tpu_custom_call.1} parent=1 // pred_region
      %460 = dma.done [#allocation4], 768
    $region25: #{tpu_custom_call.1} parent=1 // pred_fallthru
      _
    %461 = vsyncpa [#allocation3], 1
    %462 = vsyncpa [#allocation4], 1
    %463 = vsyncpa [#allocation5], 1

</llo_original>
